<compile_context>
chip_gen: v6e
topology: v6e:2x2x1
jax: 0.10.0
libtpu: 0.0.40
codegen_flags: <defaults>
</compile_context>

<pallas_src>
import math

import jax
import jax.numpy as jnp
import numpy as np
from jax.experimental import pallas as pl
from jax.experimental.pallas import tpu as pltpu


def attn_kernel(h_ref, e_ref, m_ref, whT_ref, weT_ref, b_ref, v_ref, out_ref):
    """One block of Bblk batch rows per grid step.

    h_ref:   (Bblk, H)     decoder hidden state, f32
    e_ref:   (Bblk, T, H)  encoder outputs, channels-last, f32
    m_ref:   (Bblk, T)     mask, 1.0 = masked position
    whT_ref: (H, H)        hidden half of the Linear weight, pre-transposed, bf16
    weT_ref: (H, H)        encoder half of the Linear weight, pre-transposed, bf16
    b_ref:   (1, H)        Linear bias, f32
    v_ref:   (1, H)        scoring vector v, f32
    out_ref: (Bblk, T)     softmax attention weights, f32
    """
    Bblk, T, H = e_ref.shape
    neg = jnp.float32(-1e18)

    WhT = whT_ref[...]          # (H, H) bf16
    WeT = weT_ref[...]          # (H, H) bf16
    bias = b_ref[...]           # (1, H) f32
    v = v_ref[...]              # (1, H) f32

    h = h_ref[...]              # (Bblk, H) f32
    E = e_ref[...]              # (Bblk, T, H) f32
    maskf = m_ref[...]          # (Bblk, T) f32

    # Hidden projection: once per batch row (not repeated T times).
    hproj = jnp.dot(h.astype(jnp.bfloat16), WhT,
                    preferred_element_type=jnp.float32) + bias        # (Bblk, H)

    # Encoder projection: single fused (Bblk*T, H) x (H, H) MXU matmul.
    E2 = E.reshape(Bblk * T, H)
    eproj = jnp.dot(E2.astype(jnp.bfloat16), WeT,
                    preferred_element_type=jnp.float32)                # (Bblk*T, H)

    energy = jnp.tanh(eproj.reshape(Bblk, T, H) + hproj[:, None, :])   # (Bblk, T, H)

    # v . energy as a lane reduce (keeps the MXU free of an N=1 matmul).
    scores = jnp.sum(energy * v, axis=-1)                              # (Bblk, T)

    # masked_fill(mask, -1e18) as one select; softmax in f32.
    scores = jnp.where(maskf > 0.5, neg, scores)
    mmax = jnp.max(scores, axis=-1, keepdims=True)
    ex = jnp.exp(scores - mmax)
    denom = jnp.sum(ex, axis=-1, keepdims=True)
    out_ref[...] = (ex * pl.reciprocal(denom, approx=True)).astype(out_ref.dtype)


def attn_forward(hidden, encoder_outputs, mask, params, *, block_b=8):
    """Matches Attn.forward.

    hidden:          (1, B, H) f32   (layers*directions must be 1, as the module assumes)
    encoder_outputs: (T, B, H) f32
    mask:            (B, 1, T) bool / 0-1, True = masked, or None
    params:          (W, b, v) with W (H, 2H), b (H,), v (H,)
    returns          (B, 1, T) f32 softmax attention weights
    """
    W, b, v = params
    L, B, H = hidden.shape
    T = encoder_outputs.shape[0]
    assert L == 1, "Attn assumes layers*directions == 1 (its cat would fail otherwise)"

    h = hidden[0].astype(jnp.float32)                                   # (B, H)
    E = jnp.transpose(encoder_outputs, (1, 0, 2)).astype(jnp.float32)   # (B, T, H)
    if mask is None:
        maskf = jnp.zeros((B, T), jnp.float32)
    else:
        # docstring says (B,1,T); interpret elementwise over (B, T), True = masked
        maskf = mask.reshape(B, T).astype(jnp.float32)

    # Split Linear(2H->H): y = [h;e] @ W.T + b = h @ Wh.T + e @ We.T + b.
    # Pre-transpose + pre-cast to bf16 so the kernel feeds the MXU directly.
    WhT = jnp.asarray(W[:, :H]).T.astype(jnp.bfloat16)                  # (H, H)
    WeT = jnp.asarray(W[:, H:]).T.astype(jnp.bfloat16)                  # (H, H)
    b2 = b.reshape(1, H).astype(jnp.float32)
    v2 = v.reshape(1, H).astype(jnp.float32)

    Bblk = min(B, block_b)
    grid = (pl.cdiv(B, Bblk),)

    scores = pl.pallas_call(
        attn_kernel,
        out_shape=jax.ShapeDtypeStruct((B, T), jnp.float32),
        grid=grid,
        in_specs=[
            pl.BlockSpec((Bblk, H), lambda i: (i, 0)),
            pl.BlockSpec((Bblk, T, H), lambda i: (i, 0, 0)),
            pl.BlockSpec((Bblk, T), lambda i: (i, 0)),
            pl.BlockSpec((H, H), lambda i: (0, 0)),
            pl.BlockSpec((H, H), lambda i: (0, 0)),
            pl.BlockSpec((1, H), lambda i: (0, 0)),
            pl.BlockSpec((1, H), lambda i: (0, 0)),
        ],
        out_specs=pl.BlockSpec((Bblk, T), lambda i: (i, 0)),
        compiler_params=pltpu.CompilerParams(dimension_semantics=("parallel",)),
    )(h, E, maskf, WhT, WeT, b2, v2)

    return scores[:, None, :]                                            # (B, 1, T)


def reference(hidden, encoder_outputs, mask, params):
    """Pure-JAX f32 mirror of the PyTorch forward (repeat + concat + Linear + bmm)."""
    W, b, v = params
    T, B, H = encoder_outputs.shape
    Hrep = jnp.broadcast_to(hidden[0][None, :, :], (T, B, H))
    Hrep = jnp.transpose(Hrep, (1, 0, 2))                      # (B, T, H)
    enc = jnp.transpose(encoder_outputs, (1, 0, 2))            # (B, T, H)
    x = jnp.concatenate([Hrep, enc], axis=2)                   # (B, T, 2H)
    energy = jnp.tanh(x @ W.T + b)                             # (B, T, H)
    energy = jnp.transpose(energy, (0, 2, 1))                  # (B, H, T)
    vb = jnp.broadcast_to(v[None, None, :], (B, 1, H))         # (B, 1, H)
    scores = jnp.einsum('bih,bht->bit', vb, energy)[:, 0, :]   # (B, T)
    if mask is not None:
        scores = jnp.where(mask.reshape(B, T), jnp.float32(-1e18), scores)
    return jax.nn.softmax(scores, axis=-1)[:, None, :]          # (B, 1, T)


def make_params(hidden_size, key):
    """Matches nn.Linear(2H, H) default init and the module's v init."""
    k1, k2, k3 = jax.random.split(key, 3)
    bound = 1.0 / math.sqrt(2 * hidden_size)
    W = jax.random.uniform(k1, (hidden_size, 2 * hidden_size), jnp.float32, -bound, bound)
    b = jax.random.uniform(k2, (hidden_size,), jnp.float32, -bound, bound)
    stdv = 1.0 / math.sqrt(hidden_size)
    v = stdv * jax.random.normal(k3, (hidden_size,), jnp.float32)
    return (W, b, v)


if __name__ == "__main__":
    hidden_size = 32       # H
    B, T = 2, 16           # batch, encoder length

    key = jax.random.PRNGKey(0)
    kp, kh, ke = jax.random.split(key, 3)
    params = make_params(hidden_size, kp)

    hidden = jax.random.normal(kh, (1, B, hidden_size), jnp.float32)          # (1, B, H)
    encoder_outputs = jax.random.normal(ke, (T, B, hidden_size), jnp.float32)  # (T, B, H)
    # mask: True = masked (invalid) positions; first `len` positions valid per row
    lens = jnp.array([T, 10])
    mask = (jnp.arange(T)[None, :] >= lens[:, None]).reshape(B, 1, T)          # (B, 1, T)

    out = attn_forward(hidden, encoder_outputs, mask, params)
    jax.block_until_ready(out)

    ref = reference(hidden, encoder_outputs, mask, params)
    np.testing.assert_allclose(np.asarray(out), np.asarray(ref), rtol=2e-2, atol=2e-3)
    assert out.shape == (B, 1, T)

    # also exercise the mask=None path (plain softmax over T)
    out_nm = attn_forward(hidden, encoder_outputs, None, params)
    ref_nm = reference(hidden, encoder_outputs, None, params)
    np.testing.assert_allclose(np.asarray(out_nm), np.asarray(ref_nm), rtol=2e-2, atol=2e-3)

    print("KERNEL_OK")
</pallas_src>

<mosaic_0001>
module attributes {stable_mosaic.version = 11 : i64} {
  func.func @attn_kernel(%arg0: i32, %arg1: memref<2x32xf32, #tpu.memory_space<vmem>>, %arg2: memref<2x16x32xf32, #tpu.memory_space<vmem>>, %arg3: memref<2x16xf32, #tpu.memory_space<vmem>>, %arg4: memref<32x32xbf16, #tpu.memory_space<vmem>>, %arg5: memref<32x32xbf16, #tpu.memory_space<vmem>>, %arg6: memref<1x32xf32, #tpu.memory_space<vmem>>, %arg7: memref<1x32xf32, #tpu.memory_space<vmem>>, %arg8: memref<2x16xf32, #tpu.memory_space<vmem>>) attributes {dimension_semantics = [#tpu.dimension_semantics<parallel>], iteration_bounds = array<i64: 1>, scalar_prefetch = 0 : i64, scratch_operands = 0 : i64, tpu.core_type = #tpu.core_type<tc>, window_params = [{transform_indices = @transform_0, window_bounds = array<i64: 2, 32>}, {transform_indices = @transform_1, window_bounds = array<i64: 2, 16, 32>}, {transform_indices = @transform_2, window_bounds = array<i64: 2, 16>}, {pipeline_mode = #tpu.pipeline_mode<synchronous>, transform_indices = @transform_3, window_bounds = array<i64: 32, 32>}, {pipeline_mode = #tpu.pipeline_mode<synchronous>, transform_indices = @transform_4, window_bounds = array<i64: 32, 32>}, {pipeline_mode = #tpu.pipeline_mode<synchronous>, transform_indices = @transform_5, window_bounds = array<i64: 1, 32>}, {pipeline_mode = #tpu.pipeline_mode<synchronous>, transform_indices = @transform_6, window_bounds = array<i64: 1, 32>}, {transform_indices = @transform_7, window_bounds = array<i64: 2, 16>}]} {
    %c0 = arith.constant 0 : index
    %c0_0 = arith.constant 0 : index
    %0 = vector.load %arg4[%c0, %c0_0] : memref<32x32xbf16, #tpu.memory_space<vmem>>, vector<32x32xbf16>
    %c0_1 = arith.constant 0 : index
    %c0_2 = arith.constant 0 : index
    %1 = vector.load %arg5[%c0_1, %c0_2] : memref<32x32xbf16, #tpu.memory_space<vmem>>, vector<32x32xbf16>
    %c0_3 = arith.constant 0 : index
    %c0_4 = arith.constant 0 : index
    %2 = vector.load %arg6[%c0_3, %c0_4] : memref<1x32xf32, #tpu.memory_space<vmem>>, vector<1x32xf32>
    %c0_5 = arith.constant 0 : index
    %c0_6 = arith.constant 0 : index
    %3 = vector.load %arg7[%c0_5, %c0_6] : memref<1x32xf32, #tpu.memory_space<vmem>>, vector<1x32xf32>
    %c0_7 = arith.constant 0 : index
    %c0_8 = arith.constant 0 : index
    %4 = vector.load %arg1[%c0_7, %c0_8] : memref<2x32xf32, #tpu.memory_space<vmem>>, vector<2x32xf32>
    %c0_9 = arith.constant 0 : index
    %c0_10 = arith.constant 0 : index
    %c0_11 = arith.constant 0 : index
    %5 = vector.load %arg2[%c0_9, %c0_10, %c0_11] : memref<2x16x32xf32, #tpu.memory_space<vmem>>, vector<2x16x32xf32>
    %c0_12 = arith.constant 0 : index
    %c0_13 = arith.constant 0 : index
    %6 = vector.load %arg3[%c0_12, %c0_13] : memref<2x16xf32, #tpu.memory_space<vmem>>, vector<2x16xf32>
    %7 = arith.truncf %4 : vector<2x32xf32> to vector<2x32xbf16>
    %cst = arith.constant dense<0.000000e+00> : vector<2x32xf32>
    %8 = tpu.matmul %7, %0, %cst {dimension_numbers = #tpu.dot_dimension_numbers<[1], [0], [0], [1], [0, 0, 1, 1], [], []>} : vector<2x32xbf16>, vector<32x32xbf16>, vector<2x32xf32> -> vector<2x32xf32>
    %9 = vector.broadcast %2 : vector<1x32xf32> to vector<2x32xf32>
    %10 = arith.addf %8, %9 : vector<2x32xf32>
    %11 = vector.shape_cast %5 : vector<2x16x32xf32> to vector<32x32xf32>
    %12 = arith.truncf %11 : vector<32x32xf32> to vector<32x32xbf16>
    %cst_14 = arith.constant dense<0.000000e+00> : vector<32x32xf32>
    %13 = tpu.matmul %12, %1, %cst_14 {dimension_numbers = #tpu.dot_dimension_numbers<[1], [0], [0], [1], [0, 0, 1, 1], [], []>} : vector<32x32xbf16>, vector<32x32xbf16>, vector<32x32xf32> -> vector<32x32xf32>
    %14 = vector.shape_cast %13 : vector<32x32xf32> to vector<2x16x32xf32>
    %15 = vector.shape_cast %10 : vector<2x32xf32> to vector<2x1x32xf32>
    %16 = vector.broadcast %15 : vector<2x1x32xf32> to vector<2x16x32xf32>
    %17 = arith.addf %14, %16 : vector<2x16x32xf32>
    %18 = math.tanh %17 : vector<2x16x32xf32>
    %19 = vector.shape_cast %3 : vector<1x32xf32> to vector<1x1x32xf32>
    %20 = vector.broadcast %19 : vector<1x1x32xf32> to vector<2x16x32xf32>
    %21 = arith.mulf %18, %20 : vector<2x16x32xf32>
    %cst_15 = arith.constant dense<0.000000e+00> : vector<2x16xf32>
    %22 = vector.multi_reduction <add>, %21, %cst_15 [2] : vector<2x16x32xf32> to vector<2x16xf32>
    %cst_16 = arith.constant 5.000000e-01 : f32
    %23 = vector.broadcast %cst_16 : f32 to vector<2x16xf32>
    %24 = arith.cmpf ogt, %6, %23 : vector<2x16xf32>
    %cst_17 = arith.constant -9.99999984E+17 : f32
    %25 = vector.broadcast %cst_17 : f32 to vector<2x16xf32>
    %26 = arith.select %24, %25, %22 : vector<2x16xi1>, vector<2x16xf32>
    %cst_18 = arith.constant dense<0xFF800000> : vector<2xf32>
    %27 = vector.multi_reduction <maximumf>, %26, %cst_18 [1] : vector<2x16xf32> to vector<2xf32>
    %28 = vector.shape_cast %27 : vector<2xf32> to vector<2x1xf32>
    %29 = vector.broadcast %28 : vector<2x1xf32> to vector<2x16xf32>
    %30 = arith.subf %26, %29 : vector<2x16xf32>
    %31 = math.exp %30 : vector<2x16xf32>
    %cst_19 = arith.constant dense<0.000000e+00> : vector<2xf32>
    %32 = vector.multi_reduction <add>, %31, %cst_19 [1] : vector<2x16xf32> to vector<2xf32>
    %33 = vector.shape_cast %32 : vector<2xf32> to vector<2x1xf32>
    %34 = tpu.reciprocal %33 {approx = true} : vector<2x1xf32> -> vector<2x1xf32>
    %35 = vector.broadcast %34 : vector<2x1xf32> to vector<2x16xf32>
    %36 = arith.mulf %31, %35 : vector<2x16xf32>
    %c0_20 = arith.constant 0 : index
    %c0_21 = arith.constant 0 : index
    %37 = vector.load %arg8[%c0_20, %c0_21] : memref<2x16xf32, #tpu.memory_space<vmem>>, vector<2x16xf32>
    tpu.vector_store %arg8[%c0_20, %c0_21], %36 {strides = array<i32>} : memref<2x16xf32, #tpu.memory_space<vmem>>, vector<2x16xf32>,
    return
  }
  func.func @transform_0(%arg0: i32) -> (i32, i32) {
    %c0_i32 = arith.constant 0 : i32
    %c0_i32_0 = arith.constant 0 : i32
    return %arg0, %c0_i32 : i32, i32
  }
  func.func @transform_1(%arg0: i32) -> (i32, i32, i32) {
    %c0_i32 = arith.constant 0 : i32
    %c0_i32_0 = arith.constant 0 : i32
    %c0_i32_1 = arith.constant 0 : i32
    return %arg0, %c0_i32, %c0_i32_0 : i32, i32, i32
  }
  func.func @transform_2(%arg0: i32) -> (i32, i32) {
    %c0_i32 = arith.constant 0 : i32
    %c0_i32_0 = arith.constant 0 : i32
    return %arg0, %c0_i32 : i32, i32
  }
  func.func @transform_3(%arg0: i32) -> (i32, i32) {
    %c0_i32 = arith.constant 0 : i32
    %c0_i32_0 = arith.constant 0 : i32
    %c0_i32_1 = arith.constant 0 : i32
    return %c0_i32, %c0_i32_0 : i32, i32
  }
  func.func @transform_4(%arg0: i32) -> (i32, i32) {
    %c0_i32 = arith.constant 0 : i32
    %c0_i32_0 = arith.constant 0 : i32
    %c0_i32_1 = arith.constant 0 : i32
    return %c0_i32, %c0_i32_0 : i32, i32
  }
  func.func @transform_5(%arg0: i32) -> (i32, i32) {
    %c0_i32 = arith.constant 0 : i32
    %c0_i32_0 = arith.constant 0 : i32
    %c0_i32_1 = arith.constant 0 : i32
    return %c0_i32, %c0_i32_0 : i32, i32
  }
  func.func @transform_6(%arg0: i32) -> (i32, i32) {
    %c0_i32 = arith.constant 0 : i32
    %c0_i32_0 = arith.constant 0 : i32
    %c0_i32_1 = arith.constant 0 : i32
    return %c0_i32, %c0_i32_0 : i32, i32
  }
  func.func @transform_7(%arg0: i32) -> (i32, i32) {
    %c0_i32 = arith.constant 0 : i32
    %c0_i32_0 = arith.constant 0 : i32
    return %arg0, %c0_i32 : i32, i32
  }
}

</mosaic_0001>

<llo_original>
// kernel: tpu_custom_call.1
$region0: #{tpu_custom_call.1}
  #allocation0 [shape = 'u32[]', space=smem, size = 0x4, offset = 0x4, fixed_abs, tag = 'smem constant byte address 0x4 - core index']
  #allocation1 [shape = 'u32[144,128]{1,0:T(1,128)}', space=vmem, size = 0x12000, scoped, tag = 'internal scratch']
  %s0 = inlined_call_operand.hbm [shape: f32[2,32], index: 0, kind: input, shape index: {}]
  %s1 = inlined_call_operand.hbm [shape: f32[2,16,32], index: 1, kind: input, shape index: {}]
  %s2 = inlined_call_operand.vmem [shape: f32[2,16], index: 2, kind: input, shape index: {}]
  %s3 = inlined_call_operand.hbm [shape: bf16[32,32], index: 3, kind: input, shape index: {}]
  %s4 = inlined_call_operand.hbm [shape: bf16[32,32], index: 4, kind: input, shape index: {}]
  %s5 = inlined_call_operand.vmem [shape: f32[1,32], index: 5, kind: input, shape index: {}]
  %s6 = inlined_call_operand.vmem [shape: f32[1,32], index: 6, kind: input, shape index: {}]
  %s7 = inlined_call_operand.hbm [shape: f32[2,16], index: 7, kind: output, shape index: {}]
  %s8 = sld [smem:[#allocation0]]
  $region54: #{tpu_custom_call.1} parent=0
    _
  %s10 = ssub.s32 1, %s8
  %s11 = scalar_select 0, %s10, %s8
  $region1: #{tpu_custom_call.1} parent=0
    #allocation2 [shape = 'u8[1024]{0}', space=vmem, size = 0x400, scoped, tag = 'input window, operand 0, single buffered']
    #allocation3 [shape = 's32[1]{0}', space=sflag, size = 0x4, scoped, tag = 'scoped memory for tpu_custom_call.1']
    #allocation4 [shape = 's32[1]{0}', space=sflag, size = 0x4, scoped, tag = 'scoped memory for tpu_custom_call.1']
    #allocation5 [shape = 'u8[16384]{0}', space=vmem, size = 0x4000, scoped, tag = 'input window, operand 1, single buffered']
    #allocation6 [shape = 's32[1]{0}', space=sflag, size = 0x4, scoped, tag = 'scoped memory for tpu_custom_call.1']
    #allocation7 [shape = 'u8[8192]{0}', space=vmem, size = 0x2000, scoped, tag = 'input window, operand 3, single buffered']
    #allocation8 [shape = 'u8[8192]{0}', space=vmem, size = 0x2000, scoped, tag = 'input window, operand 4, single buffered']
    #allocation9 [shape = 's32[1]{0}', space=sflag, size = 0x4, scoped, tag = 'scoped memory for tpu_custom_call.1']
    #allocation10 [shape = 'u8[1024]{0}', space=vmem, size = 0x400, scoped, tag = 'output window, operand 0, single buffered']
    %12 = vsyncpa [#allocation3], 0
    %13 = vsyncpa [#allocation6], 0
    %14 = vsyncpa [#allocation9], 0
    %15 = vsyncpa [#allocation4], 0
    // Predicated region
    $region2: #{tpu_custom_call.1} parent=1 // pred_check
      _
    $region3: #{tpu_custom_call.1} parent=1 // pred_check_branch
      %17 = sbr.rel (0) target = $region5
    $region4: #{tpu_custom_call.1} parent=1 // pred_region
      %s19 = ssub.s32 32, 32
      %20 = vsyncadd [#allocation3], %s19
      %s22 = sshll.u32 [#allocation2], 4
      %s23 = int_to_ptr.vmem [resolvable:$true] %s22
      %25 = dma.hbm_to_vmem [thread:$0]  %s0, 32, %s23, [#allocation3]
    $region5: #{tpu_custom_call.1} parent=1 // pred_fallthru
      _
    // Predicated region
    $region6: #{tpu_custom_call.1} parent=1 // pred_check
      _
    $region7: #{tpu_custom_call.1} parent=1 // pred_check_branch
      %27 = sbr.rel (0) target = $region9
    $region8: #{tpu_custom_call.1} parent=1 // pred_region
      %s29 = ssub.s32 512, 512
      %30 = vsyncadd [#allocation6], %s29
      %s31 = sshll.u32 [#allocation5], 4
      %s32 = int_to_ptr.vmem [resolvable:$true] %s31
      %37 = dma.hbm_to_vmem [thread:$0]  %s1, 512, %s32, [#allocation6], 128, 128, 8
    $region9: #{tpu_custom_call.1} parent=1 // pred_fallthru
      _
    // Predicated region
    $region10: #{tpu_custom_call.1} parent=1 // pred_check
      _
    $region11: #{tpu_custom_call.1} parent=1 // pred_check_branch
      %39 = sbr.rel (0) target = $region13
    $region12: #{tpu_custom_call.1} parent=1 // pred_region
      _
    $region13: #{tpu_custom_call.1} parent=1 // pred_fallthru
      _
    // Predicated region
    $region14: #{tpu_custom_call.1} parent=1 // pred_check
      _
    $region15: #{tpu_custom_call.1} parent=1 // pred_check_branch
      %41 = sbr.rel (0) target = $region17
    $region16: #{tpu_custom_call.1} parent=1 // pred_region
      %s43 = ssub.s32 256, 256
      %44 = vsyncadd [#allocation6], %s43
      %s45 = sshll.u32 [#allocation7], 4
      %s46 = int_to_ptr.vmem [resolvable:$true] %s45
      %51 = dma.hbm_to_vmem [thread:$0]  %s3, 256, %s46, [#allocation6], 64, 64, 4
    $region17: #{tpu_custom_call.1} parent=1 // pred_fallthru
      _
    // Predicated region
    $region18: #{tpu_custom_call.1} parent=1 // pred_check
      _
    $region19: #{tpu_custom_call.1} parent=1 // pred_check_branch
      %53 = sbr.rel (0) target = $region21
    $region20: #{tpu_custom_call.1} parent=1 // pred_region
      %s55 = ssub.s32 256, 256
      %56 = vsyncadd [#allocation9], %s55
      %s57 = sshll.u32 [#allocation8], 4
      %s58 = int_to_ptr.vmem [resolvable:$true] %s57
      %63 = dma.hbm_to_vmem [thread:$0]  %s4, 256, %s58, [#allocation9], 64, 64, 4
    $region21: #{tpu_custom_call.1} parent=1 // pred_fallthru
      _
    // Predicated region
    $region22: #{tpu_custom_call.1} parent=1 // pred_check
      _
    $region23: #{tpu_custom_call.1} parent=1 // pred_check_branch
      %65 = sbr.rel (0) target = $region25
    $region24: #{tpu_custom_call.1} parent=1 // pred_region
      _
    $region25: #{tpu_custom_call.1} parent=1 // pred_fallthru
      _
    // Predicated region
    $region26: #{tpu_custom_call.1} parent=1 // pred_check
      _
    $region27: #{tpu_custom_call.1} parent=1 // pred_check_branch
      %67 = sbr.rel (0) target = $region29
    $region28: #{tpu_custom_call.1} parent=1 // pred_region
      _
    $region29: #{tpu_custom_call.1} parent=1 // pred_fallthru
      _
    // Predicated region
    $region30: #{tpu_custom_call.1} parent=1 // pred_check
      _
    $region31: #{tpu_custom_call.1} parent=1 // pred_check_branch
      %69 = sbr.rel (0) target = $region33
    $region32: #{tpu_custom_call.1} parent=1 // pred_region
      %70 = dma.done [#allocation3], 32
    $region33: #{tpu_custom_call.1} parent=1 // pred_fallthru
      _
    // Predicated region
    $region34: #{tpu_custom_call.1} parent=1 // pred_check
      _
    $region35: #{tpu_custom_call.1} parent=1 // pred_check_branch
      %72 = sbr.rel (0) target = $region37
    $region36: #{tpu_custom_call.1} parent=1 // pred_region
      %73 = dma.done [#allocation6], 512
    $region37: #{tpu_custom_call.1} parent=1 // pred_fallthru
      _
    // Predicated region
    $region38: #{tpu_custom_call.1} parent=1 // pred_check
      _
    $region39: #{tpu_custom_call.1} parent=1 // pred_check_branch
      %75 = sbr.rel (0) target = $region41
    $region40: #{tpu_custom_call.1} parent=1 // pred_region
      %76 = dma.done [#allocation6], 256
    $region41: #{tpu_custom_call.1} parent=1 // pred_fallthru
      _
    // Predicated region
    $region42: #{tpu_custom_call.1} parent=1 // pred_check
      _
    $region43: #{tpu_custom_call.1} parent=1 // pred_check_branch
      %78 = sbr.rel (0) target = $region45
    $region44: #{tpu_custom_call.1} parent=1 // pred_region
      %79 = dma.done [#allocation9], 256
    $region45: #{tpu_custom_call.1} parent=1 // pred_fallthru
      _
    %v81 = vld [vmem:[#allocation7] sm:$0xf]
    %v82 = vld [vmem:[#allocation7 + $0x4] sm:$0xf]
    %v83 = vld [vmem:[#allocation7 + $0x8] sm:$0xf]
    %v84 = vld [vmem:[#allocation7 + $0xc] sm:$0xf]
    %v85 = vld [vmem:[#allocation8] sm:$0xf]
    %v86 = vld [vmem:[#allocation8 + $0x4] sm:$0xf]
    %v87 = vld [vmem:[#allocation8 + $0x8] sm:$0xf]
    %v88 = vld [vmem:[#allocation8 + $0xc] sm:$0xf]
    %v89 = vld [vmem:[%s5] sm:$0x1]
    %v90 = vld [vmem:[%s6] sm:$0x1]
    %v91 = vld [vmem:[#allocation2] sm:$0x3]
    %v92 = vld [vmem:[#allocation5] sm:$0xff]
    %v93 = vld [vmem:[#allocation5 + $0x8] sm:$0xff]
    %v94 = vld [vmem:[#allocation5 + $0x10] sm:$0xff]
    %v95 = vld [vmem:[#allocation5 + $0x18] sm:$0xff]
    %v96 = vld [vmem:[%s2] sm:$0x3]
    %v97 = vpack.c.bf16 %v91, %v91
    %v99 = vlaneseq
    %v100 = vshrl.u32 %v99, 7
    %v101 = vsub.s32 0, %v100
    %v102 = vrot.slane %v89, %v101
    %v108 = vunpack.c.l.b16 %v81
    %v109 = vunpack.c.l.b16 %v82
    %v110 = vunpack.c.l.b16 %v83
    %v111 = vunpack.c.l.b16 %v84
    %v112 = vpack.c.b16 %v109, %v108
    %v113 = vpack.c.b16 %v111, %v110
    %vm116 = vcmask 261120
    %v118 = vsel %vm116, %v97, 0
    %120 = vmatprep.subr.bf16.mxu0 0
    %121 = vmatpush1.bf16.msra.mxu0 0
    %122 = vmatprep.subr.bf16.mxu0 0
    %123 = vmatpush1.bf16.msra.mxu0 0
    %124 = vmatprep.subr.bf16.mxu0 0
    %125 = vmatpush1.bf16.msra.mxu0 0
    %126 = vmatprep.subr.bf16.mxu0 0
    %127 = vmatpush1.bf16.msra.mxu0 0
    %128 = vmatprep.subr.bf16.mxu0 0
    %129 = vmatpush1.bf16.msra.mxu0 0
    %130 = vmatprep.subr.bf16.mxu0 0
    %131 = vmatpush1.bf16.msra.mxu0 0
    %132 = vmatprep.subr.bf16.mxu0 0
    %133 = vmatpush1.bf16.msra.mxu0 %v113
    %134 = vmatprep.subr.bf16.mxu0 0
    %135 = vmatpush1.bf16.msra.mxu0 %v112
    %136 = vmatprep.subr.bf16.mxu0 0
    %137 = vmatpush2.bf16.msra.mxu0 0
    %138 = vmatprep.subr.bf16.mxu0 0
    %139 = vmatpush2.bf16.msra.mxu0 0
    %140 = vmatprep.subr.bf16.mxu0 0
    %141 = vmatpush2.bf16.msra.mxu0 0
    %142 = vmatprep.subr.bf16.mxu0 0
    %143 = vmatpush2.bf16.msra.mxu0 0
    %144 = vmatprep.subr.bf16.mxu0 0
    %145 = vmatpush2.bf16.msra.mxu0 0
    %146 = vmatprep.subr.bf16.mxu0 0
    %147 = vmatpush2.bf16.msra.mxu0 0
    %148 = vmatprep.subr.bf16.mxu0 0
    %149 = vmatpush2.bf16.msra.mxu0 0
    %150 = vmatprep.subr.bf16.mxu0 0
    %151 = vmatpush2.bf16.msra.mxu0 0
    %152 = vmatprep.mubr.bf16.mxu0 0
    %153 = vmatmul.mubr.bf16.gmra.mxu0 %v118
    %v154 = vpop.f32.mrf.mxu0
    %v155 = vadd.f32 %v102, %v154
    %v156 = vpop.f32.mrf.mxu0
    %v157 = vpop.f32.mrf.mxu0
    %v158 = vpop.f32.mrf.mxu0
    %159 = vdwg.mxu0
    %v160 = vpack.c.bf16 %v93, %v92
    %v161 = vpack.c.bf16 %v95, %v94
    %v166 = vunpack.c.l.b16 %v85
    %v167 = vunpack.c.l.b16 %v86
    %v168 = vunpack.c.l.b16 %v87
    %v169 = vunpack.c.l.b16 %v88
    %v170 = vpack.c.b16 %v167, %v166
    %v171 = vpack.c.b16 %v169, %v168
    %v175 = vsel %vm116, %v160, 0
    %v178 = vsel %vm116, %v161, 0
    %180 = vmatprep.subr.bf16.mxu0 0
    %181 = vmatpush1.bf16.msra.mxu0 0
    %182 = vmatprep.subr.bf16.mxu0 0
    %183 = vmatpush1.bf16.msra.mxu0 0
    %184 = vmatprep.subr.bf16.mxu0 0
    %185 = vmatpush1.bf16.msra.mxu0 0
    %186 = vmatprep.subr.bf16.mxu0 0
    %187 = vmatpush1.bf16.msra.mxu0 0
    %188 = vmatprep.subr.bf16.mxu0 0
    %189 = vmatpush1.bf16.msra.mxu0 0
    %190 = vmatprep.subr.bf16.mxu0 0
    %191 = vmatpush1.bf16.msra.mxu0 0
    %192 = vmatprep.subr.bf16.mxu0 0
    %193 = vmatpush1.bf16.msra.mxu0 %v171
    %194 = vmatprep.subr.bf16.mxu0 0
    %195 = vmatpush1.bf16.msra.mxu0 %v170
    %196 = vmatprep.subr.bf16.mxu0 0
    %197 = vmatpush2.bf16.msra.mxu0 0
    %198 = vmatprep.subr.bf16.mxu0 0
    %199 = vmatpush2.bf16.msra.mxu0 0
    %200 = vmatprep.subr.bf16.mxu0 0
    %201 = vmatpush2.bf16.msra.mxu0 0
    %202 = vmatprep.subr.bf16.mxu0 0
    %203 = vmatpush2.bf16.msra.mxu0 0
    %204 = vmatprep.subr.bf16.mxu0 0
    %205 = vmatpush2.bf16.msra.mxu0 0
    %206 = vmatprep.subr.bf16.mxu0 0
    %207 = vmatpush2.bf16.msra.mxu0 0
    %208 = vmatprep.subr.bf16.mxu0 0
    %209 = vmatpush2.bf16.msra.mxu0 0
    %210 = vmatprep.subr.bf16.mxu0 0
    %211 = vmatpush2.bf16.msra.mxu0 0
    %212 = vmatprep.mubr.bf16.mxu0 0
    %213 = vmatmul.mubr.bf16.gmra.mxu0 %v175
    %v214 = vpop.f32.mrf.mxu0
    %v215 = vadd.f32 0.0, %v214
    %v216 = vpop.f32.mrf.mxu0
    %v217 = vpop.f32.mrf.mxu0
    %v218 = vadd.f32 0.0, %v217
    %v219 = vpop.f32.mrf.mxu0
    %220 = vmatprep.mubr.bf16.mxu0 0
    %221 = vmatmul.mubr.bf16.gmra.mxu0 %v178
    %v222 = vpop.f32.mrf.mxu0
    %v223 = vadd.f32 0.0, %v222
    %v224 = vpop.f32.mrf.mxu0
    %v225 = vpop.f32.mrf.mxu0
    %v226 = vadd.f32 0.0, %v225
    %v227 = vpop.f32.mrf.mxu0
    %228 = vdwg.mxu0
    %v231 = vunpack.c.l.s4 1966171168
    %v232 = vunpack.c.0.s8 %v231
    %v233 = vlaneseq
    %v234 = vshrl.u32 %v233, 7
    %v235 = vsub.s32 %v232, %v234
    %v236 = vrot.slane %v155, %v235
    %v237 = vcombine.high %v236, %v236
    %v239 = vunpack.c.l.s4 1966171168
    %v240 = vunpack.c.0.s8 %v239
    %v241 = vlaneseq
    %v242 = vshrl.u32 %v241, 7
    %v243 = vsub.s32 %v240, %v242
    %v244 = vrot.slane %v236, %v243
    %v246 = vunpack.c.l.s4 1966171168
    %v247 = vunpack.c.0.s8 %v246
    %v248 = vlaneseq
    %v249 = vshrl.u32 %v248, 7
    %v250 = vsub.s32 %v247, %v249
    %v251 = vrot.slane %v237, %v250
    %v252 = vlaneseq
    %v253 = vshrl.u32 %v252, 7
    %v254 = vsub.s32 0, %v253
    %v255 = vrot.slane %v244, %v254
    %v256 = vlaneseq
    %v257 = vshrl.u32 %v256, 7
    %v258 = vsub.s32 0, %v257
    %v259 = vrot.slane %v251, %v258
    %v262 = vadd.f32 %v215, %v255
    %v263 = vadd.f32 %v218, %v255
    %v264 = vadd.f32 %v223, %v259
    %v265 = vadd.f32 %v226, %v259
    %v266 = vtanh.pop %v262
    %v267 = vtanh.pop %v263
    %v268 = vtanh.pop %v264
    %v269 = vtanh.pop %v265
    %v271 = vlaneseq
    %v272 = vshrl.u32 %v271, 7
    %v273 = vsub.s32 0, %v272
    %v274 = vrot.slane %v90, %v273
    %v276 = vmul.f32 %v266, %v274
    %v277 = vmul.f32 %v267, %v274
    %v278 = vmul.f32 %v268, %v274
    %v279 = vmul.f32 %v269, %v274
    %v280 = vsel %vm116, %v276, 0.0
    %281 = vadd.xlane.f32.xlu0 %v280
    %v282 = vpop.xlane.xlu0 %281
    %v283 = vsel %vm116, %v277, 0.0
    %284 = vadd.xlane.f32.xlu0 %v283
    %v285 = vpop.xlane.xlu0 %284
    %v286 = vsel %vm116, %v278, 0.0
    %287 = vadd.xlane.f32.xlu0 %v286
    %v288 = vpop.xlane.xlu0 %287
    %v289 = vsel %vm116, %v279, 0.0
    %290 = vadd.xlane.f32.xlu0 %v289
    %v291 = vpop.xlane.xlu0 %290
    %vm292 = vcmp.gt.f32.partialorder %v96, 0.5
    %v297 = vlaneseq
    %v298 = vand.u32 %v297, 127
    %v299 = vlaneseq
    %v300 = vshrl.u32 %v299, 7
    %v301 = vsub.s32 %v298, %v300
    %v302 = vrot.slane %v282, %v301
    %v303 = vadd.s32 %v298, 4294967288
    %v304 = vlaneseq
    %v305 = vshrl.u32 %v304, 7
    %v306 = vsub.s32 %v303, %v305
    %v307 = vrot.slane %v285, %v306
    %vm308 = vcmask 130112
    %v309 = vsel %vm308, %v307, %v302
    %v310 = vlaneseq
    %v311 = vshrl.u32 %v310, 7
    %v312 = vsub.s32 %v298, %v311
    %v313 = vrot.slane %v288, %v312
    %v314 = vlaneseq
    %v315 = vshrl.u32 %v314, 7
    %v316 = vsub.s32 %v303, %v315
    %v317 = vrot.slane %v291, %v316
    %v318 = vsel %vm308, %v317, %v313
    %vm319 = vcmask 1041409
    %v320 = vsel %vm319, %v318, %v309
    %v322 = vsel %vm292, -1e+18, %v320
    %vm323 = vcmask 123904
    %v324 = vsel %vm323, %v322, -inf
    %325 = vmax.xlane.f32.xlu0 %v324
    %v326 = vpop.xlane.xlu0 %325
    %v327 = vsub.f32 %v322, %v326
    %v328 = vmul.f32 %v327, 1.442695
    %v329 = vpow.pop %v328
    %v330 = vsel %vm323, %v329, 0.0
    %331 = vadd.xlane.f32.xlu0 %v330
    %v332 = vpop.xlane.xlu0 %331
    %v333 = vrcp.pop %v332
    %v334 = vmul.f32 %v329, %v333
    %335 = vst.msk [vmem:[#allocation10] sm:$0x3] %vm323, %v334
    // Predicated region
    $region46: #{tpu_custom_call.1} parent=1 // pred_check
      _
    $region47: #{tpu_custom_call.1} parent=1 // pred_check_branch
      %337 = sbr.rel (0) target = $region49
    $region48: #{tpu_custom_call.1} parent=1 // pred_region
      %s339 = ssub.s32 32, 32
      %340 = vsyncadd [#allocation4], %s339
      %s342 = sshll.u32 [#allocation10], 4
      %s343 = int_to_ptr.vmem [resolvable:$true] %s342
      %345 = dma.vmem_to_hbm [thread:$0]  %s343, 32, %s7, [#allocation4]
    $region49: #{tpu_custom_call.1} parent=1 // pred_fallthru
      _
    // Predicated region
    $region50: #{tpu_custom_call.1} parent=1 // pred_check
      _
    $region51: #{tpu_custom_call.1} parent=1 // pred_check_branch
      %347 = sbr.rel (0) target = $region53
    $region52: #{tpu_custom_call.1} parent=1 // pred_region
      %348 = dma.done [#allocation4], 32
    $region53: #{tpu_custom_call.1} parent=1 // pred_fallthru
      _
    %349 = vsyncpa [#allocation3], 1
    %350 = vsyncpa [#allocation6], 1
    %351 = vsyncpa [#allocation9], 1
    %352 = vsyncpa [#allocation4], 1

</llo_original>
